<compile_context>
chip_gen: v6e
topology: v6e:2x2x1
jax: 0.10.0
libtpu: 0.0.40
codegen_flags: <defaults>
</compile_context>

<pallas_src>
import functools

import jax
import jax.numpy as jnp
from jax import lax
from jax.experimental import pallas as pl
from jax.experimental.pallas import tpu as pltpu

_NEG_INF = -1e30


def _round_up(x: int, m: int) -> int:
    return (x + m - 1) // m * m


def _l2_normalize(x):
    """Matches torch F.normalize(x, dim=-1): x / max(||x||, 1e-12)."""
    x = x.astype(jnp.float32)
    n = jnp.sqrt(jnp.sum(x * x, axis=-1, keepdims=True))
    return x / jnp.maximum(n, 1e-12)


def _vmem_bytes(tile_bp: int, tile_ba: int, d_pad: int, abuf: int) -> int:
    """Rough actual-VMEM-usage estimate for a tile configuration (bf16 inputs)."""
    return (abuf * tile_ba * d_pad * 2      # anchors stream (bf16, abuf-deep pipeline)
            + 2 * tile_bp * d_pad * 2       # positives block (bf16, double-buffered)
            + 5 * tile_ba * tile_bp * 4     # logits block + elementwise temporaries (f32)
            + 8 * tile_bp * 4               # labels / out / accumulator rows
            + (1 << 20))                    # headroom


def _infonce_kernel(anchors_ref, positives_ref, labels_ref, loss_ref,
                    m_scr, l_scr, t_scr,
                    *, tile_ba: int, valid_ba: int, mask_last: bool):
    j = pl.program_id(1)

    # --- init accumulators at the start of the B_a reduction ---
    @pl.when(j == 0)
    def _():
        m_scr[...] = jnp.full_like(m_scr, _NEG_INF)
        l_scr[...] = jnp.zeros_like(l_scr)
        t_scr[...] = jnp.zeros_like(t_scr)

    # --- logits block: rows = anchors, cols = positives (already normalized,
    #     1/temperature folded into positives); bf16 operands, f32 accumulation ---
    logits = lax.dot_general(anchors_ref[...], positives_ref[...],
                             dimension_numbers=(((1,), (1,)), ((), ())),
                             preferred_element_type=jnp.float32)      # [tile_ba, tile_bp]

    row = lax.broadcasted_iota(jnp.int32, (tile_ba, 1), 0)            # tiny (sublane iota)

    if mask_last:
        # Padding exists only in the last B_a block (ba_pad = round_up(B_a, tile_ba));
        # interior blocks see an all-zero bias.  Only emitted when padding exists.
        bias = jnp.where(row + j * tile_ba < valid_ba, 0.0, _NEG_INF)  # [tile_ba, 1]
        logits = logits + bias

    # --- fused target-logit gather: one-hot over anchor rows ---
    labels = labels_ref[0]                                            # [1, tile_bp] int32
    onehot = row == (labels - j * tile_ba)                            # [tile_ba, tile_bp]
    # NOTE: out-of-range labels (>= B_a) silently contribute a target logit of 0.
    t_blk = jnp.sum(jnp.where(onehot, logits, 0.0), axis=0, keepdims=True)

    # --- online softmax update (per positive, i.e. per lane) ---
    m_prev = m_scr[...]
    m_new = jnp.maximum(m_prev, jnp.max(logits, axis=0, keepdims=True))
    alpha = jnp.exp(m_prev - m_new)
    p_exp = jnp.exp(logits - m_new)
    l_scr[...] = alpha * l_scr[...] + jnp.sum(p_exp, axis=0, keepdims=True)
    t_scr[...] = t_scr[...] + t_blk
    m_scr[...] = m_new

    # --- finalize per-row cross-entropy on the last B_a block (lane-dense store) ---
    @pl.when(j == pl.num_programs(1) - 1)
    def _():
        loss_ref[0] = m_scr[...] + jnp.log(l_scr[...]) - t_scr[...]


def infonce_loss(anchors, positives, labels, temperature=0.1, reduction="mean",
                 tile_bp=1024, tile_ba=512):
    """anchors: [B_a, D], positives: [B_p, D], labels: int [B_p] -> cross-entropy loss."""
    B_a, D = anchors.shape
    B_p, D2 = positives.shape
    assert D == D2
    assert labels.shape == (B_p,)

    D_pad = _round_up(D, 128)   # lane-aligned feature dim for every block / MXU pass

    # ---- tile selection ---------------------------------------------------
    tile_ba = max(8, min(int(tile_ba), _round_up(B_a, 8)))
    tile_ba = _round_up(tile_ba, 8)

    if B_p <= 128:
        # Single B_p block: lane dim of labels/out blocks equals the full dim.
        tile_bp = _round_up(B_p, 8)
    else:
        # Multi-block: lane dim must be a multiple of 128.
        tile_bp = max(128, min(int(tile_bp), _round_up(B_p, 128)))
        tile_bp = _round_up(tile_bp, 128)

    # Keep actual VMEM usage well inside v7x's 64 MiB (v5e/v6e have 128 MiB).
    VMEM_BUDGET = 40 * 1024 * 1024
    abuf = 3
    while _vmem_bytes(tile_bp, tile_ba, D_pad, abuf) > VMEM_BUDGET:
        if tile_ba > 256:
            tile_ba //= 2
        elif tile_bp > 128:
            tile_bp //= 2
        elif tile_ba > 8:
            tile_ba = _round_up(tile_ba // 2, 8)
        else:
            break

    # v7x megacore: keep >= 2 blocks on the "parallel" B_p axis when B_p allows.
    if B_p > 128 and _round_up(B_p, tile_bp) // tile_bp < 2:
        tile_bp = _round_up(-(-B_p // 2), 128)

    bp_pad = _round_up(B_p, tile_bp)
    ba_pad = _round_up(B_a, tile_ba)
    grid0 = bp_pad // tile_bp
    grid1 = ba_pad // tile_ba
    mask_last = (ba_pad != B_a)

    # ---- one-time wrapper preprocessing: normalize, fold 1/T, cast bf16, pad ----
    inv_temp = 1.0 / float(temperature)
    a_n = _l2_normalize(anchors)
    p_n = _l2_normalize(positives) * inv_temp
    a_n = jnp.pad(a_n, ((0, ba_pad - B_a), (0, D_pad - D))).astype(jnp.bfloat16)
    p_n = jnp.pad(p_n, ((0, bp_pad - B_p), (0, D_pad - D))).astype(jnp.bfloat16)
    lab = jnp.pad(labels.astype(jnp.int32), (0, bp_pad - B_p)).reshape(grid0, 1, tile_bp)

    kernel = functools.partial(
        _infonce_kernel,
        tile_ba=int(tile_ba),
        valid_ba=int(B_a),
        mask_last=bool(mask_last),
    )

    # Anchors are the streamed, bandwidth-critical operand: deepen its pipeline
    # when the reduction is long enough for a 3rd buffer to matter.
    if grid1 >= 3:
        anchors_spec = pl.BlockSpec((tile_ba, D_pad), lambda i, j: (j, 0),
                                    pipeline_mode=pl.Buffered(3))
    else:
        anchors_spec = pl.BlockSpec((tile_ba, D_pad), lambda i, j: (j, 0))

    vmem_est = _vmem_bytes(tile_bp, tile_ba, D_pad, abuf)
    vmem_limit = int(min(max(vmem_est + (16 << 20), 32 << 20), 56 << 20))

    cost = pl.CostEstimate(
        flops=int(2 * bp_pad * ba_pad * D_pad),
        transcendentals=int(bp_pad * ba_pad + 2 * bp_pad),
        bytes_accessed=int(2 * (grid0 * ba_pad * D_pad + bp_pad * D_pad)
                           + 4 * (bp_pad + grid0 * tile_bp)),
    )

    out = pl.pallas_call(
        kernel,
        out_shape=jax.ShapeDtypeStruct((grid0, 1, tile_bp), jnp.float32),
        grid_spec=pltpu.PrefetchScalarGridSpec(
            num_scalar_prefetch=0,
            grid=(grid0, grid1),
            in_specs=[
                anchors_spec,                                          # streamed over j
                pl.BlockSpec((tile_bp, D_pad), lambda i, j: (i, 0)),   # resident over j
                pl.BlockSpec((1, 1, tile_bp), lambda i, j: (i, 0, 0)),  # labels (lane-dense)
            ],
            out_specs=pl.BlockSpec((1, 1, tile_bp), lambda i, j: (i, 0, 0)),
            scratch_shapes=[
                pltpu.VMEM((1, tile_bp), jnp.float32),   # running max
                pltpu.VMEM((1, tile_bp), jnp.float32),   # running sum-exp
                pltpu.VMEM((1, tile_bp), jnp.float32),   # running target logit
            ],
        ),
        compiler_params=pltpu.CompilerParams(
            dimension_semantics=("parallel", "arbitrary"),
            vmem_limit_bytes=vmem_limit,
        ),
        cost_estimate=cost,
    )(a_n, p_n, lab)

    per_row = out.reshape(-1)[:B_p]
    if reduction == "mean":
        return jnp.mean(per_row)
    if reduction == "sum":
        return jnp.sum(per_row)
    return per_row   # reduction == 'none'


def infonce_ref(anchors, positives, labels, temperature=0.1):
    """Pure-JAX f32 reference of the PyTorch module (for sanity checking)."""
    def norm(x):
        n = jnp.sqrt(jnp.sum(x * x, axis=-1, keepdims=True))
        return x / jnp.maximum(n, 1e-12)
    a = norm(anchors.astype(jnp.float32))
    p = norm(positives.astype(jnp.float32))
    logits = (p @ a.T) / temperature
    lse = jax.nn.logsumexp(logits, axis=-1)
    tgt = jnp.take_along_axis(logits, labels.astype(jnp.int32)[:, None], axis=-1)[:, 0]
    return jnp.mean(lse - tgt)


if __name__ == "__main__":
    key = jax.random.PRNGKey(0)
    k_a, k_p, k_l = jax.random.split(key, 3)

    B_a, B_p, D = 8, 8, 32
    anchors = jax.random.normal(k_a, (B_a, D), dtype=jnp.float32)
    positives = jax.random.normal(k_p, (B_p, D), dtype=jnp.float32)
    labels = jax.random.randint(k_l, (B_p,), 0, B_a, dtype=jnp.int32)

    loss = jax.jit(infonce_loss)(anchors, positives, labels)
    jax.block_until_ready(loss)

    ref = infonce_ref(anchors, positives, labels)
    # Tolerance loosened vs f32 reference: MXU operands are bf16 (per perf review).
    assert jnp.allclose(loss, ref, atol=5e-2, rtol=5e-2), (loss, ref)

    print("KERNEL_OK")
</pallas_src>

<mosaic_0001>
module attributes {stable_mosaic.version = 11 : i64} {
  func.func @_infonce_kernel(%arg0: i32, %arg1: i32, %arg2: memref<8x128xbf16, #tpu.memory_space<vmem>>, %arg3: memref<8x128xbf16, #tpu.memory_space<vmem>>, %arg4: memref<1x1x8xi32, #tpu.memory_space<vmem>>, %arg5: memref<1x1x8xf32, #tpu.memory_space<vmem>>, %arg6: memref<1x8xf32, #tpu.memory_space<vmem>>, %arg7: memref<1x8xf32, #tpu.memory_space<vmem>>, %arg8: memref<1x8xf32, #tpu.memory_space<vmem>>) attributes {dimension_semantics = [#tpu.dimension_semantics<parallel>, #tpu.dimension_semantics<arbitrary>], iteration_bounds = array<i64: 1, 1>, scalar_prefetch = 0 : i64, scratch_operands = 3 : i64, tpu.core_type = #tpu.core_type<tc>, window_params = [{transform_indices = @transform_0, window_bounds = array<i64: 8, 128>}, {transform_indices = @transform_1, window_bounds = array<i64: 8, 128>}, {transform_indices = @transform_2, window_bounds = array<i64: 1, 1, 8>}, {transform_indices = @transform_3, window_bounds = array<i64: 1, 1, 8>}]} {
    %c0_i32 = arith.constant 0 : i32
    %0 = arith.cmpi eq, %arg1, %c0_i32 : i32
    %1 = arith.extui %0 : i1 to i32
    %c0_i32_0 = arith.constant 0 : i32
    %2 = arith.cmpi ne, %1, %c0_i32_0 : i32
    scf.if %2 {
      %cst_25 = arith.constant -1.000000e+30 : f32
      %41 = vector.broadcast %cst_25 : f32 to vector<1x8xf32>
      %c0_26 = arith.constant 0 : index
      %c0_27 = arith.constant 0 : index
      %42 = vector.load %arg6[%c0_26, %c0_27] : memref<1x8xf32, #tpu.memory_space<vmem>>, vector<1x8xf32>
      tpu.vector_store %arg6[%c0_26, %c0_27], %41 {strides = array<i32>} : memref<1x8xf32, #tpu.memory_space<vmem>>, vector<1x8xf32>,
      %cst_28 = arith.constant 0.000000e+00 : f32
      %43 = vector.broadcast %cst_28 : f32 to vector<1x8xf32>
      %c0_29 = arith.constant 0 : index
      %c0_30 = arith.constant 0 : index
      %44 = vector.load %arg7[%c0_29, %c0_30] : memref<1x8xf32, #tpu.memory_space<vmem>>, vector<1x8xf32>
      tpu.vector_store %arg7[%c0_29, %c0_30], %43 {strides = array<i32>} : memref<1x8xf32, #tpu.memory_space<vmem>>, vector<1x8xf32>,
      %cst_31 = arith.constant 0.000000e+00 : f32
      %45 = vector.broadcast %cst_31 : f32 to vector<1x8xf32>
      %c0_32 = arith.constant 0 : index
      %c0_33 = arith.constant 0 : index
      %46 = vector.load %arg8[%c0_32, %c0_33] : memref<1x8xf32, #tpu.memory_space<vmem>>, vector<1x8xf32>
      tpu.vector_store %arg8[%c0_32, %c0_33], %45 {strides = array<i32>} : memref<1x8xf32, #tpu.memory_space<vmem>>, vector<1x8xf32>,
    } else {
    }
    %c0 = arith.constant 0 : index
    %c0_1 = arith.constant 0 : index
    %3 = vector.load %arg2[%c0, %c0_1] : memref<8x128xbf16, #tpu.memory_space<vmem>>, vector<8x128xbf16>
    %c0_2 = arith.constant 0 : index
    %c0_3 = arith.constant 0 : index
    %4 = vector.load %arg3[%c0_2, %c0_3] : memref<8x128xbf16, #tpu.memory_space<vmem>>, vector<8x128xbf16>
    %cst = arith.constant dense<0.000000e+00> : vector<8x8xf32>
    %5 = tpu.matmul %3, %4, %cst {dimension_numbers = #tpu.dot_dimension_numbers<[1], [1], [0], [0], [0, 0, 1, 0], [], []>} : vector<8x128xbf16>, vector<8x128xbf16>, vector<8x8xf32> -> vector<8x8xf32>
    %6 = tpu.iota {dimensions = array<i32: 0>} : vector<8x1xi32>
    %c0_4 = arith.constant 0 : index
    %c0_5 = arith.constant 0 : index
    %c0_6 = arith.constant 0 : index
    %7 = vector.load %arg4[%c0_4, %c0_5, %c0_6] : memref<1x1x8xi32, #tpu.memory_space<vmem>>, vector<1x1x8xi32>
    %8 = vector.shape_cast %7 : vector<1x1x8xi32> to vector<1x8xi32>
    %c8_i32 = arith.constant 8 : i32
    %9 = arith.muli %arg1, %c8_i32 : i32
    %10 = vector.broadcast %9 : i32 to vector<1x8xi32>
    %11 = arith.subi %8, %10 : vector<1x8xi32>
    %12 = vector.broadcast %6 : vector<8x1xi32> to vector<8x8xi32>
    %13 = vector.broadcast %11 : vector<1x8xi32> to vector<8x8xi32>
    %14 = arith.cmpi eq, %12, %13 : vector<8x8xi32>
    %cst_7 = arith.constant 0.000000e+00 : f32
    %15 = vector.broadcast %cst_7 : f32 to vector<8x8xf32>
    %16 = arith.select %14, %5, %15 : vector<8x8xi1>, vector<8x8xf32>
    %cst_8 = arith.constant dense<0.000000e+00> : vector<8xf32>
    %17 = vector.multi_reduction <add>, %16, %cst_8 [0] : vector<8x8xf32> to vector<8xf32>
    %18 = vector.shape_cast %17 : vector<8xf32> to vector<1x8xf32>
    %c0_9 = arith.constant 0 : index
    %c0_10 = arith.constant 0 : index
    %19 = vector.load %arg6[%c0_9, %c0_10] : memref<1x8xf32, #tpu.memory_space<vmem>>, vector<1x8xf32>
    %cst_11 = arith.constant dense<0xFF800000> : vector<8xf32>
    %20 = vector.multi_reduction <maximumf>, %5, %cst_11 [0] : vector<8x8xf32> to vector<8xf32>
    %21 = vector.shape_cast %20 : vector<8xf32> to vector<1x8xf32>
    %22 = arith.maximumf %19, %21 : vector<1x8xf32>
    %23 = arith.subf %19, %22 : vector<1x8xf32>
    %24 = math.exp %23 : vector<1x8xf32>
    %25 = vector.broadcast %22 : vector<1x8xf32> to vector<8x8xf32>
    %26 = arith.subf %5, %25 : vector<8x8xf32>
    %27 = math.exp %26 : vector<8x8xf32>
    %c0_12 = arith.constant 0 : index
    %c0_13 = arith.constant 0 : index
    %28 = vector.load %arg7[%c0_12, %c0_13] : memref<1x8xf32, #tpu.memory_space<vmem>>, vector<1x8xf32>
    %29 = arith.mulf %24, %28 : vector<1x8xf32>
    %cst_14 = arith.constant dense<0.000000e+00> : vector<8xf32>
    %30 = vector.multi_reduction <add>, %27, %cst_14 [0] : vector<8x8xf32> to vector<8xf32>
    %31 = vector.shape_cast %30 : vector<8xf32> to vector<1x8xf32>
    %32 = arith.addf %29, %31 : vector<1x8xf32>
    %c0_15 = arith.constant 0 : index
    %c0_16 = arith.constant 0 : index
    %33 = vector.load %arg7[%c0_15, %c0_16] : memref<1x8xf32, #tpu.memory_space<vmem>>, vector<1x8xf32>
    tpu.vector_store %arg7[%c0_15, %c0_16], %32 {strides = array<i32>} : memref<1x8xf32, #tpu.memory_space<vmem>>, vector<1x8xf32>,
    %c0_17 = arith.constant 0 : index
    %c0_18 = arith.constant 0 : index
    %34 = vector.load %arg8[%c0_17, %c0_18] : memref<1x8xf32, #tpu.memory_space<vmem>>, vector<1x8xf32>
    %35 = arith.addf %34, %18 : vector<1x8xf32>
    %c0_19 = arith.constant 0 : index
    %c0_20 = arith.constant 0 : index
    %36 = vector.load %arg8[%c0_19, %c0_20] : memref<1x8xf32, #tpu.memory_space<vmem>>, vector<1x8xf32>
    tpu.vector_store %arg8[%c0_19, %c0_20], %35 {strides = array<i32>} : memref<1x8xf32, #tpu.memory_space<vmem>>, vector<1x8xf32>,
    %c0_21 = arith.constant 0 : index
    %c0_22 = arith.constant 0 : index
    %37 = vector.load %arg6[%c0_21, %c0_22] : memref<1x8xf32, #tpu.memory_space<vmem>>, vector<1x8xf32>
    tpu.vector_store %arg6[%c0_21, %c0_22], %22 {strides = array<i32>} : memref<1x8xf32, #tpu.memory_space<vmem>>, vector<1x8xf32>,
    %c0_i32_23 = arith.constant 0 : i32
    %38 = arith.cmpi eq, %arg1, %c0_i32_23 : i32
    %39 = arith.extui %38 : i1 to i32
    %c0_i32_24 = arith.constant 0 : i32
    %40 = arith.cmpi ne, %39, %c0_i32_24 : i32
    scf.if %40 {
      %c0_25 = arith.constant 0 : index
      %c0_26 = arith.constant 0 : index
      %41 = vector.load %arg6[%c0_25, %c0_26] : memref<1x8xf32, #tpu.memory_space<vmem>>, vector<1x8xf32>
      %c0_27 = arith.constant 0 : index
      %c0_28 = arith.constant 0 : index
      %42 = vector.load %arg7[%c0_27, %c0_28] : memref<1x8xf32, #tpu.memory_space<vmem>>, vector<1x8xf32>
      %43 = math.log %42 : vector<1x8xf32>
      %44 = arith.addf %41, %43 : vector<1x8xf32>
      %c0_29 = arith.constant 0 : index
      %c0_30 = arith.constant 0 : index
      %45 = vector.load %arg8[%c0_29, %c0_30] : memref<1x8xf32, #tpu.memory_space<vmem>>, vector<1x8xf32>
      %46 = arith.subf %44, %45 : vector<1x8xf32>
      %c0_31 = arith.constant 0 : index
      %c0_32 = arith.constant 0 : index
      %c0_33 = arith.constant 0 : index
      %47 = vector.load %arg5[%c0_31, %c0_32, %c0_33] : memref<1x1x8xf32, #tpu.memory_space<vmem>>, vector<1x1x8xf32>
      %48 = vector.shape_cast %47 : vector<1x1x8xf32> to vector<1x8xf32>
      %49 = vector.shape_cast %46 : vector<1x8xf32> to vector<1x1x8xf32>
      tpu.vector_store %arg5[%c0_31, %c0_32, %c0_33], %49 {strides = array<i32>} : memref<1x1x8xf32, #tpu.memory_space<vmem>>, vector<1x1x8xf32>,
    } else {
    }
    return
  }
  func.func @transform_0(%arg0: i32, %arg1: i32) -> (i32, i32) {
    %c0_i32 = arith.constant 0 : i32
    %c0_i32_0 = arith.constant 0 : i32
    return %arg1, %c0_i32 : i32, i32
  }
  func.func @transform_1(%arg0: i32, %arg1: i32) -> (i32, i32) {
    %c0_i32 = arith.constant 0 : i32
    %c0_i32_0 = arith.constant 0 : i32
    return %arg0, %c0_i32 : i32, i32
  }
  func.func @transform_2(%arg0: i32, %arg1: i32) -> (i32, i32, i32) {
    %c0_i32 = arith.constant 0 : i32
    %c0_i32_0 = arith.constant 0 : i32
    %c0_i32_1 = arith.constant 0 : i32
    return %arg0, %c0_i32, %c0_i32_0 : i32, i32, i32
  }
  func.func @transform_3(%arg0: i32, %arg1: i32) -> (i32, i32, i32) {
    %c0_i32 = arith.constant 0 : i32
    %c0_i32_0 = arith.constant 0 : i32
    %c0_i32_1 = arith.constant 0 : i32
    return %arg0, %c0_i32, %c0_i32_0 : i32, i32, i32
  }
}

</mosaic_0001>

<llo_original>
// kernel: infonce_loss.1
$region0: #{infonce_loss.1}
  #allocation0 [shape = 'u32[]', space=smem, size = 0x4, offset = 0x4, fixed_abs, tag = 'smem constant byte address 0x4 - core index']
  #allocation1 [shape = 'u32[144,128]{1,0:T(1,128)}', space=vmem, size = 0x12000, scoped, tag = 'internal scratch']
  #allocation2 [shape = 'f32[1,8]{1,0:T(1,128)}', space=vmem, size = 0x200, scoped, tag = 'scratch operand']
  #allocation3 [shape = 'f32[1,8]{1,0:T(1,128)}', space=vmem, size = 0x200, scoped, tag = 'scratch operand']
  #allocation4 [shape = 'f32[1,8]{1,0:T(1,128)}', space=vmem, size = 0x200, scoped, tag = 'scratch operand']
  %s0 = inlined_call_operand.vmem [shape: bf16[8,128], index: 0, kind: input, shape index: {}]
  %s1 = inlined_call_operand.vmem [shape: bf16[8,128], index: 1, kind: input, shape index: {}]
  %s2 = inlined_call_operand.vmem [shape: s32[1,1,8], index: 2, kind: input, shape index: {}]
  %s3 = inlined_call_operand.vmem [shape: f32[1,1,8], index: 3, kind: output, shape index: {}]
  %s4 = sld [smem:[#allocation0]]
  $region30: #{infonce_loss.1} parent=0
    _
  %s6 = ssub.s32 1, %s4
  %s7 = scalar_select 0, %s6, %s4
  // Predicated region
  $region2: #{infonce_loss.1} parent=0 // pred_check
    _
  $region3: #{infonce_loss.1} parent=0 // pred_check_branch
    %9 = sbr.rel (0) target = $region5
  $region4: #{infonce_loss.1} parent=0 // pred_region
    _
  $region5: #{infonce_loss.1} parent=0 // pred_fallthru
    _
  // Predicated region
  $region6: #{infonce_loss.1} parent=0 // pred_check
    _
  $region7: #{infonce_loss.1} parent=0 // pred_check_branch
    %11 = sbr.rel (0) target = $region9
  $region8: #{infonce_loss.1} parent=0 // pred_region
    _
  $region9: #{infonce_loss.1} parent=0 // pred_fallthru
    _
  // Predicated region
  $region10: #{infonce_loss.1} parent=0 // pred_check
    _
  $region11: #{infonce_loss.1} parent=0 // pred_check_branch
    %13 = sbr.rel (0) target = $region13
  $region12: #{infonce_loss.1} parent=0 // pred_region
    _
  $region13: #{infonce_loss.1} parent=0 // pred_fallthru
    _
  %p15 = scmp.eq.s32.totalorder 0, 0
  // Predicated region
  $region14: #{infonce_loss.1} parent=0 // pred_check
    %p16 = pneg %p15
  $region15: #{infonce_loss.1} parent=0 // pred_check_branch
    %18 = sbr.rel (%p16) target = $region17
  $region16: #{infonce_loss.1} parent=0 // pred_region
    %vm19 = vcmask 57344
    %20 = vst.msk [vmem:[#allocation2] sm:$0x1] %vm19, -1e+30
    %21 = vst.msk [vmem:[#allocation3] sm:$0x1] %vm19, 0.0
    %22 = vst.msk [vmem:[#allocation4] sm:$0x1] %vm19, 0.0
  $region17: #{infonce_loss.1} parent=0 // pred_fallthru
    _
  %v23 = vld [vmem:[%s0] sm:$0xf]
  %v24 = vld [vmem:[%s1] sm:$0xf]
  %25 = vmatprep.subr.bf16.mxu0 0
  %26 = vmatpush1.bf16.xpose.msra.mxu0 0
  %27 = vmatprep.subr.bf16.mxu0 0
  %28 = vmatpush1.bf16.xpose.msra.mxu0 0
  %29 = vmatprep.subr.bf16.mxu0 0
  %30 = vmatpush1.bf16.xpose.msra.mxu0 0
  %31 = vmatprep.subr.bf16.mxu0 0
  %32 = vmatpush1.bf16.xpose.msra.mxu0 0
  %33 = vmatprep.subr.bf16.mxu0 0
  %34 = vmatpush1.bf16.xpose.msra.mxu0 0
  %35 = vmatprep.subr.bf16.mxu0 0
  %36 = vmatpush1.bf16.xpose.msra.mxu0 0
  %37 = vmatprep.subr.bf16.mxu0 0
  %38 = vmatpush1.bf16.xpose.msra.mxu0 0
  %39 = vmatprep.subr.bf16.mxu0 0
  %40 = vmatpush1.bf16.xpose.msra.mxu0 %v24
  %41 = vmatprep.subr.bf16.mxu0 0
  %42 = vmatpush2.bf16.xpose.msra.mxu0 0
  %43 = vmatprep.subr.bf16.mxu0 0
  %44 = vmatpush2.bf16.xpose.msra.mxu0 0
  %45 = vmatprep.subr.bf16.mxu0 0
  %46 = vmatpush2.bf16.xpose.msra.mxu0 0
  %47 = vmatprep.subr.bf16.mxu0 0
  %48 = vmatpush2.bf16.xpose.msra.mxu0 0
  %49 = vmatprep.subr.bf16.mxu0 0
  %50 = vmatpush2.bf16.xpose.msra.mxu0 0
  %51 = vmatprep.subr.bf16.mxu0 0
  %52 = vmatpush2.bf16.xpose.msra.mxu0 0
  %53 = vmatprep.subr.bf16.mxu0 0
  %54 = vmatpush2.bf16.xpose.msra.mxu0 0
  %55 = vmatprep.subr.bf16.mxu0 0
  %56 = vmatpush2.bf16.xpose.msra.mxu0 0
  %57 = vmatprep.mubr.bf16.mxu0 0
  %58 = vmatmul.mubr.bf16.gmra.mxu0 %v23
  %v59 = vpop.f32.mrf.mxu0
  %v60 = vadd.f32 0.0, %v59
  %v61 = vpop.f32.mrf.mxu0
  %v62 = vpop.f32.mrf.mxu0
  %v63 = vpop.f32.mrf.mxu0
  %64 = vdwg.mxu0
  %v65 = vlaneseq
  %v66 = vshrl.u32 %v65, 7
  %v67 = vld [vmem:[%s2] sm:$0x1]
  %s68 = smul.u32 0, 8
  %v69 = vstv %s68
  %v70 = vsub.s32 %v67, %v69
  %v71 = vlaneseq
  %v72 = vshrl.u32 %v71, 7
  %v73 = vsub.s32 0, %v72
  %v74 = vrot.slane %v70, %v73
  %vm75 = vcmp.eq.s32.totalorder %v66, %v74
  %v76 = vsel %vm75, %v60, 0.0
  %vm77 = vcmask 64512
  %v78 = vsel %vm77, %v76, 0.0
  %v79 = vrot.slane %v78, 4
  %v80 = vadd.f32 %v78, %v79
  %v81 = vrot.slane %v80, 2
  %v82 = vadd.f32 %v80, %v81
  %v83 = vrot.slane %v82, 1
  %v84 = vadd.f32 %v82, %v83
  %v85 = vld [vmem:[#allocation2] sm:$0x1]
  %v86 = vsel %vm77, %v60, -inf
  %v87 = vrot.slane %v86, 4
  %v88 = vmax.f32 %v86, %v87
  %v89 = vrot.slane %v88, 2
  %v90 = vmax.f32 %v88, %v89
  %v91 = vrot.slane %v90, 1
  %v92 = vmax.f32 %v90, %v91
  %v93 = vmax.f32 %v85, %v92
  %v94 = vsub.f32 %v85, %v93
  %v95 = vmul.f32 %v94, 1.442695
  %v96 = vpow.pop %v95
  %v98 = vlaneseq
  %v99 = vshrl.u32 %v98, 7
  %v100 = vsub.s32 0, %v99
  %v101 = vrot.slane %v93, %v100
  %v103 = vsub.f32 %v60, %v101
  %v104 = vmul.f32 %v103, 1.442695
  %v105 = vpow.pop %v104
  %v106 = vld [vmem:[#allocation3] sm:$0x1]
  %v107 = vmul.f32 %v96, %v106
  %v108 = vsel %vm77, %v105, 0.0
  %v109 = vrot.slane %v108, 4
  %v110 = vadd.f32 %v108, %v109
  %v111 = vrot.slane %v110, 2
  %v112 = vadd.f32 %v110, %v111
  %v113 = vrot.slane %v112, 1
  %v114 = vadd.f32 %v112, %v113
  %v115 = vadd.f32 %v107, %v114
  %vm116 = vcmask 57344
  %117 = vst.msk [vmem:[#allocation3] sm:$0x1] %vm116, %v115
  %v118 = vld [vmem:[#allocation4] sm:$0x1]
  %v119 = vadd.f32 %v118, %v84
  %120 = vst.msk [vmem:[#allocation4] sm:$0x1] %vm116, %v119
  %121 = vst.msk [vmem:[#allocation2] sm:$0x1] %vm116, %v93
  // Predicated region
  $region18: #{infonce_loss.1} parent=0 // pred_check
    %p122 = pneg %p15
  $region19: #{infonce_loss.1} parent=0 // pred_check_branch
    %124 = sbr.rel (%p122) target = $region21
  $region20: #{infonce_loss.1} parent=0 // pred_region
    %v125 = vld [vmem:[#allocation2] sm:$0x1]
    %v126 = vld [vmem:[#allocation3] sm:$0x1]
    %v127 = vlog2.pop %v126
    %v128 = vmul.f32 %v127, 0.6931472
    %v129 = vadd.f32 %v125, %v128
    %v130 = vld [vmem:[#allocation4] sm:$0x1]
    %v131 = vsub.f32 %v129, %v130
    %132 = vst.msk [vmem:[%s3] sm:$0x1] %vm116, %v131
  $region21: #{infonce_loss.1} parent=0 // pred_fallthru
    _
  // Predicated region
  $region22: #{infonce_loss.1} parent=0 // pred_check
    _
  $region23: #{infonce_loss.1} parent=0 // pred_check_branch
    %134 = sbr.rel (0) target = $region25
  $region24: #{infonce_loss.1} parent=0 // pred_region
    _
  $region25: #{infonce_loss.1} parent=0 // pred_fallthru
    _
  // Predicated region
  $region26: #{infonce_loss.1} parent=0 // pred_check
    _
  $region27: #{infonce_loss.1} parent=0 // pred_check_branch
    %136 = sbr.rel (0) target = $region29
  $region28: #{infonce_loss.1} parent=0 // pred_region
    _
  $region29: #{infonce_loss.1} parent=0 // pred_fallthru
    _

</llo_original>
